<compile_context>
chip_gen: v7x
topology: tpu7x:2x2x1
jax: 0.10.0
libtpu: 0.0.40
codegen_flags: <defaults>
</compile_context>

<pallas_src>
import functools

import jax
import jax.numpy as jnp
from jax.experimental import pallas as pl
from jax.experimental.pallas import tpu as pltpu

# Layer dims of the PyTorch module.
D_IN, D_H1, D_H2, D_OUT = 14, 14, 10, 3


def mlp_kernel(x_ref, w1_ref, b1_ref, w2_ref, b2_ref, w3_ref, b3_ref, o_ref):
    x = x_ref[...]                        # (14, TB)  streamed per grid step
    w1 = w1_ref[...]                      # (14, 14)  VMEM-resident
    w2 = w2_ref[...]                      # (10, 14)  VMEM-resident
    w3 = w3_ref[...]                      # (3, 10)   VMEM-resident

    # fc1 + ReLU
    h1 = jnp.dot(w1, x, preferred_element_type=jnp.float32) + b1_ref[...]
    h1 = jnp.maximum(h1, 0.0)             # (14, TB)

    # fc2 + ReLU
    h2 = jnp.dot(w2, h1, preferred_element_type=jnp.float32) + b2_ref[...]
    h2 = jnp.maximum(h2, 0.0)             # (10, TB)

    # fc3
    logits = jnp.dot(w3, h2, preferred_element_type=jnp.float32) + b3_ref[...]
    # (3, TB)

    # log_softmax over the class axis (sublane axis, 3 rows), numerically stable.
    m = jnp.max(logits, axis=0, keepdims=True)
    shifted = logits - m
    lse = jnp.log(jnp.sum(jnp.exp(shifted), axis=0, keepdims=True))
    o_ref[...] = (shifted - lse).astype(o_ref.dtype)


def _pick_tile(b_pad, block_b):
    """Lane-tile: multiple of 128 that divides b_pad, <= block_b, >=2 steps if possible."""
    groups = b_pad // 128
    want = max(-(-b_pad // block_b), 2 if groups >= 2 else 1)
    steps = want
    while groups % steps != 0:            # terminates: groups % groups == 0
        steps += 1
    return b_pad // steps


@functools.partial(jax.jit, static_argnames=("block_b",))
def net_forward(x, params, *, block_b=4096):
    """x: (B, 14) float32 -> (B, 3) float32 log-probabilities."""
    w1, b1, w2, b2, w3, b3 = params       # PyTorch layout: w (out, in), b (out,)
    b1c = b1.reshape(D_H1, 1)
    b2c = b2.reshape(D_H2, 1)
    b3c = b3.reshape(D_OUT, 1)

    B = x.shape[0]
    block_b = max(128, block_b)
    b_pad = ((B + 127) // 128) * 128      # lane axis must tile in 128s

    x_t = x.T                             # (14, B): batch on the lane axis
    if b_pad != B:
        # Only taken for ragged batches; demo batch is a multiple of 128.
        x_t = jnp.pad(x_t, ((0, 0), (0, b_pad - B)))

    tb = _pick_tile(b_pad, block_b)
    grid = (b_pad // tb,)

    macs = D_IN * D_H1 + D_H1 * D_H2 + D_H2 * D_OUT      # 366 MACs / sample
    param_bytes = 4 * (D_IN * D_H1 + D_H1 + D_H1 * D_H2 + D_H2 + D_H2 * D_OUT + D_OUT)
    cost = pl.CostEstimate(
        flops=2 * b_pad * macs,
        transcendentals=4 * b_pad,                        # 3x exp + 1x log per sample
        bytes_accessed=4 * b_pad * (D_IN + D_OUT) + param_bytes,
    )

    out_t = pl.pallas_call(
        mlp_kernel,
        out_shape=jax.ShapeDtypeStruct((D_OUT, b_pad), jnp.float32),
        grid=grid,
        in_specs=[
            pl.BlockSpec((D_IN, tb), lambda i: (0, i)),        # streamed activations
            pl.BlockSpec((D_H1, D_IN), lambda i: (0, 0)),      # w1, resident
            pl.BlockSpec((D_H1, 1), lambda i: (0, 0)),         # b1, resident
            pl.BlockSpec((D_H2, D_H1), lambda i: (0, 0)),      # w2, resident
            pl.BlockSpec((D_H2, 1), lambda i: (0, 0)),         # b2, resident
            pl.BlockSpec((D_OUT, D_H2), lambda i: (0, 0)),     # w3, resident
            pl.BlockSpec((D_OUT, 1), lambda i: (0, 0)),        # b3, resident
        ],
        out_specs=pl.BlockSpec((D_OUT, tb), lambda i: (0, i)),  # lane-dense output
        compiler_params=pltpu.CompilerParams(
            dimension_semantics=("parallel",)),
        cost_estimate=cost,
    )(x_t, w1, b1c, w2, b2c, w3, b3c)

    if b_pad != B:
        out_t = out_t[:, :B]
    return out_t.T                         # (B, 3)


def net_reference(x, params):
    """Pure-JAX reference matching the PyTorch forward."""
    w1, b1, w2, b2, w3, b3 = params
    h1 = jax.nn.relu(x @ w1.T + b1)
    h2 = jax.nn.relu(h1 @ w2.T + b2)
    return jax.nn.log_softmax(h2 @ w3.T + b3, axis=-1)


def init_params(key):
    """Deterministic init mirroring nn.Linear default (uniform +-1/sqrt(fan_in)).

    Weights stored PyTorch-style as (out_features, in_features); biases (out,)."""
    dims = [(D_H1, D_IN), (D_H2, D_H1), (D_OUT, D_H2)]
    params = []
    for (fan_out, fan_in) in dims:
        key, kw, kb = jax.random.split(key, 3)
        bound = 1.0 / jnp.sqrt(fan_in)
        w = jax.random.uniform(kw, (fan_out, fan_in), jnp.float32, -bound, bound)
        b = jax.random.uniform(kb, (fan_out,), jnp.float32, -bound, bound)
        params += [w, b]
    return tuple(params)


if __name__ == "__main__":
    key = jax.random.PRNGKey(0)
    key, kx = jax.random.split(key)

    batch = 1024                      # multiple of 128 -> no pad; 2 grid steps
    x = jax.random.normal(kx, (batch, D_IN), dtype=jnp.float32)
    params = init_params(key)

    out = net_forward(x, params, block_b=4096)
    out = jax.block_until_ready(out)

    # Correctness vs. pure-JAX reference + log_softmax row-normalization check.
    ref = net_reference(x, params)
    assert out.shape == (batch, D_OUT)
    assert bool(jnp.allclose(out, ref, atol=1e-3, rtol=1e-3))
    row_sums = jnp.sum(jnp.exp(out), axis=1)
    assert bool(jnp.all(jnp.abs(row_sums - 1.0) < 1e-4))

    print("KERNEL_OK")
</pallas_src>

<mosaic_0001>
module attributes {stable_mosaic.version = 11 : i64} {
  func.func @mlp_kernel(%arg0: i32, %arg1: memref<14x512xf32, #tpu.memory_space<vmem>>, %arg2: memref<14x14xf32, #tpu.memory_space<vmem>>, %arg3: memref<14x1xf32, #tpu.memory_space<vmem>>, %arg4: memref<10x14xf32, #tpu.memory_space<vmem>>, %arg5: memref<10x1xf32, #tpu.memory_space<vmem>>, %arg6: memref<3x10xf32, #tpu.memory_space<vmem>>, %arg7: memref<3x1xf32, #tpu.memory_space<vmem>>, %arg8: memref<3x512xf32, #tpu.memory_space<vmem>>) attributes {dimension_semantics = [#tpu.dimension_semantics<parallel>], iteration_bounds = array<i64: 2>, scalar_prefetch = 0 : i64, scratch_operands = 0 : i64, tpu.core_type = #tpu.core_type<tc>, window_params = [{transform_indices = @transform_0, window_bounds = array<i64: 14, 512>}, {pipeline_mode = #tpu.pipeline_mode<synchronous>, transform_indices = @transform_1, window_bounds = array<i64: 14, 14>}, {pipeline_mode = #tpu.pipeline_mode<synchronous>, transform_indices = @transform_2, window_bounds = array<i64: 14, 1>}, {pipeline_mode = #tpu.pipeline_mode<synchronous>, transform_indices = @transform_3, window_bounds = array<i64: 10, 14>}, {pipeline_mode = #tpu.pipeline_mode<synchronous>, transform_indices = @transform_4, window_bounds = array<i64: 10, 1>}, {pipeline_mode = #tpu.pipeline_mode<synchronous>, transform_indices = @transform_5, window_bounds = array<i64: 3, 10>}, {pipeline_mode = #tpu.pipeline_mode<synchronous>, transform_indices = @transform_6, window_bounds = array<i64: 3, 1>}, {transform_indices = @transform_7, window_bounds = array<i64: 3, 512>}]} {
    %c0 = arith.constant 0 : index
    %c0_0 = arith.constant 0 : index
    %0 = vector.load %arg1[%c0, %c0_0] : memref<14x512xf32, #tpu.memory_space<vmem>>, vector<14x512xf32>
    %c0_1 = arith.constant 0 : index
    %c0_2 = arith.constant 0 : index
    %1 = vector.load %arg2[%c0_1, %c0_2] : memref<14x14xf32, #tpu.memory_space<vmem>>, vector<14x14xf32>
    %c0_3 = arith.constant 0 : index
    %c0_4 = arith.constant 0 : index
    %2 = vector.load %arg4[%c0_3, %c0_4] : memref<10x14xf32, #tpu.memory_space<vmem>>, vector<10x14xf32>
    %c0_5 = arith.constant 0 : index
    %c0_6 = arith.constant 0 : index
    %3 = vector.load %arg6[%c0_5, %c0_6] : memref<3x10xf32, #tpu.memory_space<vmem>>, vector<3x10xf32>
    %cst = arith.constant dense<0.000000e+00> : vector<14x512xf32>
    %4 = tpu.matmul %1, %0, %cst {dimension_numbers = #tpu.dot_dimension_numbers<[1], [0], [0], [1], [0, 0, 1, 1], [], []>} : vector<14x14xf32>, vector<14x512xf32>, vector<14x512xf32> -> vector<14x512xf32>
    %c0_7 = arith.constant 0 : index
    %c0_8 = arith.constant 0 : index
    %5 = vector.load %arg3[%c0_7, %c0_8] : memref<14x1xf32, #tpu.memory_space<vmem>>, vector<14x1xf32>
    %6 = vector.broadcast %5 : vector<14x1xf32> to vector<14x512xf32>
    %7 = arith.addf %4, %6 : vector<14x512xf32>
    %cst_9 = arith.constant 0.000000e+00 : f32
    %8 = vector.broadcast %cst_9 : f32 to vector<14x512xf32>
    %9 = arith.maximumf %7, %8 : vector<14x512xf32>
    %cst_10 = arith.constant dense<0.000000e+00> : vector<10x512xf32>
    %10 = tpu.matmul %2, %9, %cst_10 {dimension_numbers = #tpu.dot_dimension_numbers<[1], [0], [0], [1], [0, 0, 1, 1], [], []>} : vector<10x14xf32>, vector<14x512xf32>, vector<10x512xf32> -> vector<10x512xf32>
    %c0_11 = arith.constant 0 : index
    %c0_12 = arith.constant 0 : index
    %11 = vector.load %arg5[%c0_11, %c0_12] : memref<10x1xf32, #tpu.memory_space<vmem>>, vector<10x1xf32>
    %12 = vector.broadcast %11 : vector<10x1xf32> to vector<10x512xf32>
    %13 = arith.addf %10, %12 : vector<10x512xf32>
    %cst_13 = arith.constant 0.000000e+00 : f32
    %14 = vector.broadcast %cst_13 : f32 to vector<10x512xf32>
    %15 = arith.maximumf %13, %14 : vector<10x512xf32>
    %cst_14 = arith.constant dense<0.000000e+00> : vector<3x512xf32>
    %16 = tpu.matmul %3, %15, %cst_14 {dimension_numbers = #tpu.dot_dimension_numbers<[1], [0], [0], [1], [0, 0, 1, 1], [], []>} : vector<3x10xf32>, vector<10x512xf32>, vector<3x512xf32> -> vector<3x512xf32>
    %c0_15 = arith.constant 0 : index
    %c0_16 = arith.constant 0 : index
    %17 = vector.load %arg7[%c0_15, %c0_16] : memref<3x1xf32, #tpu.memory_space<vmem>>, vector<3x1xf32>
    %18 = vector.broadcast %17 : vector<3x1xf32> to vector<3x512xf32>
    %19 = arith.addf %16, %18 : vector<3x512xf32>
    %cst_17 = arith.constant dense<0xFF800000> : vector<512xf32>
    %20 = vector.multi_reduction <maximumf>, %19, %cst_17 [0] : vector<3x512xf32> to vector<512xf32>
    %21 = vector.shape_cast %20 : vector<512xf32> to vector<1x512xf32>
    %22 = vector.broadcast %21 : vector<1x512xf32> to vector<3x512xf32>
    %23 = arith.subf %19, %22 : vector<3x512xf32>
    %24 = math.exp %23 : vector<3x512xf32>
    %cst_18 = arith.constant dense<0.000000e+00> : vector<512xf32>
    %25 = vector.multi_reduction <add>, %24, %cst_18 [0] : vector<3x512xf32> to vector<512xf32>
    %26 = vector.shape_cast %25 : vector<512xf32> to vector<1x512xf32>
    %27 = math.log %26 : vector<1x512xf32>
    %28 = vector.broadcast %27 : vector<1x512xf32> to vector<3x512xf32>
    %29 = arith.subf %23, %28 : vector<3x512xf32>
    %c0_19 = arith.constant 0 : index
    %c0_20 = arith.constant 0 : index
    %30 = vector.load %arg8[%c0_19, %c0_20] : memref<3x512xf32, #tpu.memory_space<vmem>>, vector<3x512xf32>
    tpu.vector_store %arg8[%c0_19, %c0_20], %29 {strides = array<i32>} : memref<3x512xf32, #tpu.memory_space<vmem>>, vector<3x512xf32>,
    return
  }
  func.func @transform_0(%arg0: i32) -> (i32, i32) {
    %c0_i32 = arith.constant 0 : i32
    %c0_i32_0 = arith.constant 0 : i32
    return %c0_i32, %arg0 : i32, i32
  }
  func.func @transform_1(%arg0: i32) -> (i32, i32) {
    %c0_i32 = arith.constant 0 : i32
    %c0_i32_0 = arith.constant 0 : i32
    %c0_i32_1 = arith.constant 0 : i32
    return %c0_i32, %c0_i32_0 : i32, i32
  }
  func.func @transform_2(%arg0: i32) -> (i32, i32) {
    %c0_i32 = arith.constant 0 : i32
    %c0_i32_0 = arith.constant 0 : i32
    %c0_i32_1 = arith.constant 0 : i32
    return %c0_i32, %c0_i32_0 : i32, i32
  }
  func.func @transform_3(%arg0: i32) -> (i32, i32) {
    %c0_i32 = arith.constant 0 : i32
    %c0_i32_0 = arith.constant 0 : i32
    %c0_i32_1 = arith.constant 0 : i32
    return %c0_i32, %c0_i32_0 : i32, i32
  }
  func.func @transform_4(%arg0: i32) -> (i32, i32) {
    %c0_i32 = arith.constant 0 : i32
    %c0_i32_0 = arith.constant 0 : i32
    %c0_i32_1 = arith.constant 0 : i32
    return %c0_i32, %c0_i32_0 : i32, i32
  }
  func.func @transform_5(%arg0: i32) -> (i32, i32) {
    %c0_i32 = arith.constant 0 : i32
    %c0_i32_0 = arith.constant 0 : i32
    %c0_i32_1 = arith.constant 0 : i32
    return %c0_i32, %c0_i32_0 : i32, i32
  }
  func.func @transform_6(%arg0: i32) -> (i32, i32) {
    %c0_i32 = arith.constant 0 : i32
    %c0_i32_0 = arith.constant 0 : i32
    %c0_i32_1 = arith.constant 0 : i32
    return %c0_i32, %c0_i32_0 : i32, i32
  }
  func.func @transform_7(%arg0: i32) -> (i32, i32) {
    %c0_i32 = arith.constant 0 : i32
    %c0_i32_0 = arith.constant 0 : i32
    return %c0_i32, %arg0 : i32, i32
  }
}

</mosaic_0001>

<llo_original>
// kernel: net_forward.1
$region0: #{net_forward.1}
  #allocation0 [shape = 'u32[]', space=smem, size = 0x4, offset = 0x4, fixed_abs, tag = 'smem constant byte address 0x4 - core index']
  #allocation1 [shape = 'u32[144,128]{1,0:T(1,128)}', space=vmem, size = 0x12000, scoped, tag = 'internal scratch']
  %s0 = inlined_call_operand.hbm [shape: f32[14,1024], index: 0, kind: input, shape index: {}]
  %s1 = inlined_call_operand.vmem [shape: f32[14,14], index: 1, kind: input, shape index: {}]
  %s2 = inlined_call_operand.vmem [shape: f32[14,1], index: 2, kind: input, shape index: {}]
  %s3 = inlined_call_operand.vmem [shape: f32[10,14], index: 3, kind: input, shape index: {}]
  %s4 = inlined_call_operand.vmem [shape: f32[10,1], index: 4, kind: input, shape index: {}]
  %s5 = inlined_call_operand.vmem [shape: f32[3,10], index: 5, kind: input, shape index: {}]
  %s6 = inlined_call_operand.vmem [shape: f32[3,1], index: 6, kind: input, shape index: {}]
  %s7 = inlined_call_operand.hbm [shape: f32[3,1024], index: 7, kind: output, shape index: {}]
  %s8 = sld [smem:[#allocation0]]
  $region65: #{net_forward.1} parent=0
    _
  %s10 = ssub.s32 1, %s8
  %s11 = scalar_select 0, %s10, %s8
  $region1: #{net_forward.1} parent=0
    #allocation2 [shape = 'u8[65536]{0}', space=vmem, size = 0x10000, scoped, tag = 'input window, operand 0']
    #allocation3 [shape = 's32[2]{0}', space=sflag, size = 0x8, scoped, tag = 'scoped memory for net_forward.1']
    #allocation4 [shape = 's32[2]{0}', space=sflag, size = 0x8, scoped, tag = 'scoped memory for net_forward.1']
    #allocation5 [shape = 'u8[16384]{0}', space=vmem, size = 0x4000, scoped, tag = 'output window, operand 0']
    %12 = vsyncpa [#allocation3], 0
    %s13 = scalar_lea.sflag [#allocation3], 1
    %14 = vsyncpa %s13, 0
    %15 = vsyncpa [#allocation4], 0
    %s16 = scalar_lea.sflag [#allocation4], 1
    %17 = vsyncpa %s16, 0
    loop: start=0, step=1, limit=4
    $region2: #{net_forward.1} parent=1 // loop_pre_header
      _
    $region3: #{net_forward.1} parent=1 // loop_header
      %s19 = sphi 0, %s23
      %p20 = scmp.ge.s32.totalorder %s19, 4
      %s29 = sphi 0, %s31
      %s32 = sphi 0, %s29
      %s33 = sphi 0, %s32
      %s49 = sphi 0, %s33
      %s53 = sphi 0, %s53
      %s55 = sphi 0, %s53
      %s56 = sphi 0, %s55
      %s70 = sphi 0, %s56
      %s74 = sphi 0, %s74
      %s76 = sphi 0, %s74
      %s77 = sphi 0, %s76
      %s91 = sphi 0, %s77
      %s95 = sphi 0, %s95
      %s97 = sphi 0, %s95
      %s98 = sphi 0, %s97
      %s112 = sphi 0, %s98
      %s116 = sphi 0, %s116
      %s118 = sphi 0, %s116
      %s119 = sphi 0, %s118
      %s133 = sphi 0, %s119
      %s137 = sphi 0, %s137
      %s139 = sphi 0, %s137
      %s140 = sphi 0, %s139
      %s154 = sphi 0, %s140
      %s158 = sphi 0, %s158
      %s160 = sphi 0, %s158
      %s161 = sphi 0, %s160
      %s175 = sphi 0, %s161
      %s181 = sphi 0, %s183
      %s184 = sphi 0, %s181
      %s185 = sphi 0, %s184
      %s201 = sphi 0, %s185
    $region4: #{net_forward.1} parent=1 // loop_header_branch
      %22 = sbr.rel (%p20) target = $region8
    $region5: #{net_forward.1} parent=1 // loop_body
      %s24 = ssub.s32 %s19, 1
      %s25 = ssub.s32 %s19, 2
      %s26 = sadd.s32 %s19, 1
      %s27 = ssub.s32 %s19, %s26
      %p28 = scmp.eq.s32.totalorder %s27, 0
      %s30 = sadd.s32 %s29, 1
      %s31 = scalar_select %p28, %s29, %s30
      %p34 = pneg %p28
      %p35 = scmp.eq.s32.totalorder %s19, 1
      %p36 = por %p34, %p35
      %p37 = scmp.ne.s32.totalorder %s29, %s32
      %p38 = scmp.eq.s32.totalorder %s19, 0
      %p39 = por %p37, %p38
      %p40 = scmp.ne.s32.totalorder %s29, %s32
      %p41 = scmp.eq.s32.totalorder %s24, 1
      %p42 = por %p40, %p41
      %p43 = scmp.ne.s32.totalorder %s32, %s33
      %p44 = scmp.eq.s32.totalorder %s24, 0
      %p45 = por %p43, %p44
      %p46 = scmp.ne.s32.totalorder %s32, %s33
      %p47 = scmp.eq.s32.totalorder %s25, 1
      %p48 = por %p46, %p47
      %p50 = scmp.ne.s32.totalorder %s33, %s49
      %p51 = scmp.eq.s32.totalorder %s25, 0
      %p52 = por %p50, %p51
      %s54 = sadd.s32 %s53, 1
      %p57 = scmp.eq.s32.totalorder %s19, 1
      %p58 = scmp.ne.s32.totalorder %s53, %s55
      %p59 = scmp.eq.s32.totalorder %s19, 0
      %p60 = por %p58, %p59
      %p61 = scmp.ne.s32.totalorder %s53, %s55
      %p62 = scmp.eq.s32.totalorder %s24, 1
      %p63 = por %p61, %p62
      %p64 = scmp.ne.s32.totalorder %s55, %s56
      %p65 = scmp.eq.s32.totalorder %s24, 0
      %p66 = por %p64, %p65
      %p67 = scmp.ne.s32.totalorder %s55, %s56
      %p68 = scmp.eq.s32.totalorder %s25, 1
      %p69 = por %p67, %p68
      %p71 = scmp.ne.s32.totalorder %s56, %s70
      %p72 = scmp.eq.s32.totalorder %s25, 0
      %p73 = por %p71, %p72
      %s75 = sadd.s32 %s74, 1
      %p78 = scmp.eq.s32.totalorder %s19, 1
      %p79 = scmp.ne.s32.totalorder %s74, %s76
      %p80 = scmp.eq.s32.totalorder %s19, 0
      %p81 = por %p79, %p80
      %p82 = scmp.ne.s32.totalorder %s74, %s76
      %p83 = scmp.eq.s32.totalorder %s24, 1
      %p84 = por %p82, %p83
      %p85 = scmp.ne.s32.totalorder %s76, %s77
      %p86 = scmp.eq.s32.totalorder %s24, 0
      %p87 = por %p85, %p86
      %p88 = scmp.ne.s32.totalorder %s76, %s77
      %p89 = scmp.eq.s32.totalorder %s25, 1
      %p90 = por %p88, %p89
      %p92 = scmp.ne.s32.totalorder %s77, %s91
      %p93 = scmp.eq.s32.totalorder %s25, 0
      %p94 = por %p92, %p93
      %s96 = sadd.s32 %s95, 1
      %p99 = scmp.eq.s32.totalorder %s19, 1
      %p100 = scmp.ne.s32.totalorder %s95, %s97
      %p101 = scmp.eq.s32.totalorder %s19, 0
      %p102 = por %p100, %p101
      %p103 = scmp.ne.s32.totalorder %s95, %s97
      %p104 = scmp.eq.s32.totalorder %s24, 1
      %p105 = por %p103, %p104
      %p106 = scmp.ne.s32.totalorder %s97, %s98
      %p107 = scmp.eq.s32.totalorder %s24, 0
      %p108 = por %p106, %p107
      %p109 = scmp.ne.s32.totalorder %s97, %s98
      %p110 = scmp.eq.s32.totalorder %s25, 1
      %p111 = por %p109, %p110
      %p113 = scmp.ne.s32.totalorder %s98, %s112
      %p114 = scmp.eq.s32.totalorder %s25, 0
      %p115 = por %p113, %p114
      %s117 = sadd.s32 %s116, 1
      %p120 = scmp.eq.s32.totalorder %s19, 1
      %p121 = scmp.ne.s32.totalorder %s116, %s118
      %p122 = scmp.eq.s32.totalorder %s19, 0
      %p123 = por %p121, %p122
      %p124 = scmp.ne.s32.totalorder %s116, %s118
      %p125 = scmp.eq.s32.totalorder %s24, 1
      %p126 = por %p124, %p125
      %p127 = scmp.ne.s32.totalorder %s118, %s119
      %p128 = scmp.eq.s32.totalorder %s24, 0
      %p129 = por %p127, %p128
      %p130 = scmp.ne.s32.totalorder %s118, %s119
      %p131 = scmp.eq.s32.totalorder %s25, 1
      %p132 = por %p130, %p131
      %p134 = scmp.ne.s32.totalorder %s119, %s133
      %p135 = scmp.eq.s32.totalorder %s25, 0
      %p136 = por %p134, %p135
      %s138 = sadd.s32 %s137, 1
      %p141 = scmp.eq.s32.totalorder %s19, 1
      %p142 = scmp.ne.s32.totalorder %s137, %s139
      %p143 = scmp.eq.s32.totalorder %s19, 0
      %p144 = por %p142, %p143
      %p145 = scmp.ne.s32.totalorder %s137, %s139
      %p146 = scmp.eq.s32.totalorder %s24, 1
      %p147 = por %p145, %p146
      %p148 = scmp.ne.s32.totalorder %s139, %s140
      %p149 = scmp.eq.s32.totalorder %s24, 0
      %p150 = por %p148, %p149
      %p151 = scmp.ne.s32.totalorder %s139, %s140
      %p152 = scmp.eq.s32.totalorder %s25, 1
      %p153 = por %p151, %p152
      %p155 = scmp.ne.s32.totalorder %s140, %s154
      %p156 = scmp.eq.s32.totalorder %s25, 0
      %p157 = por %p155, %p156
      %s159 = sadd.s32 %s158, 1
      %p162 = scmp.eq.s32.totalorder %s19, 1
      %p163 = scmp.ne.s32.totalorder %s158, %s160
      %p164 = scmp.eq.s32.totalorder %s19, 0
      %p165 = por %p163, %p164
      %p166 = scmp.ne.s32.totalorder %s158, %s160
      %p167 = scmp.eq.s32.totalorder %s24, 1
      %p168 = por %p166, %p167
      %p169 = scmp.ne.s32.totalorder %s160, %s161
      %p170 = scmp.eq.s32.totalorder %s24, 0
      %p171 = por %p169, %p170
      %p172 = scmp.ne.s32.totalorder %s160, %s161
      %p173 = scmp.eq.s32.totalorder %s25, 1
      %p174 = por %p172, %p173
      %p176 = scmp.ne.s32.totalorder %s161, %s175
      %p177 = scmp.eq.s32.totalorder %s25, 0
      %p178 = por %p176, %p177
      %s179 = ssub.s32 %s19, %s26
      %p180 = scmp.eq.s32.totalorder %s179, 0
      %s182 = sadd.s32 %s181, 1
      %s183 = scalar_select %p180, %s181, %s182
      %p186 = pneg %p180
      %p187 = scmp.eq.s32.totalorder %s19, 1
      %p188 = por %p186, %p187
      %p189 = scmp.ne.s32.totalorder %s181, %s184
      %p190 = scmp.eq.s32.totalorder %s19, 0
      %p191 = por %p189, %p190
      %p192 = scmp.ne.s32.totalorder %s181, %s184
      %p193 = scmp.eq.s32.totalorder %s24, 1
      %p194 = por %p192, %p193
      %p195 = scmp.ne.s32.totalorder %s184, %s185
      %p196 = scmp.eq.s32.totalorder %s24, 0
      %p197 = por %p195, %p196
      %p198 = scmp.ne.s32.totalorder %s184, %s185
      %p199 = scmp.eq.s32.totalorder %s25, 1
      %p200 = por %p198, %p199
      %p202 = scmp.ne.s32.totalorder %s185, %s201
      %p203 = scmp.eq.s32.totalorder %s25, 0
      %p204 = por %p202, %p203
      %p205 = scmp.le.s32.totalorder 1, %s19
      %p206 = scmp.lt.s32.totalorder %s19, 3
      %p207 = pnand %p205, %p206
      %p208 = pneg %p207
      // Predicated region
      $region9: #{net_forward.1} parent=5 // pred_check
        _
      $region10: #{net_forward.1} parent=5 // pred_check_branch
        %210 = sbr.rel (%p207) target = $region12
      $region11: #{net_forward.1} parent=5 // pred_region
        %s211 = ssub.s32 %s19, 1
        // Predicated region
        $region13: #{net_forward.1} parent=11 // pred_check
          %p212 = pneg %p66
        $region14: #{net_forward.1} parent=11 // pred_check_branch
          %214 = sbr.rel (%p212) target = $region16
        $region15: #{net_forward.1} parent=11 // pred_region
          _
        $region16: #{net_forward.1} parent=11 // pred_fallthru
          _
        // Predicated region
        $region17: #{net_forward.1} parent=11 // pred_check
          %p215 = pneg %p87
        $region18: #{net_forward.1} parent=11 // pred_check_branch
          %217 = sbr.rel (%p215) target = $region20
        $region19: #{net_forward.1} parent=11 // pred_region
          _
        $region20: #{net_forward.1} parent=11 // pred_fallthru
          _
        // Predicated region
        $region21: #{net_forward.1} parent=11 // pred_check
          %p218 = pneg %p108
        $region22: #{net_forward.1} parent=11 // pred_check_branch
          %220 = sbr.rel (%p218) target = $region24
        $region23: #{net_forward.1} parent=11 // pred_region
          _
        $region24: #{net_forward.1} parent=11 // pred_fallthru
          _
        // Predicated region
        $region25: #{net_forward.1} parent=11 // pred_check
          %p221 = pneg %p129
        $region26: #{net_forward.1} parent=11 // pred_check_branch
          %223 = sbr.rel (%p221) target = $region28
        $region27: #{net_forward.1} parent=11 // pred_region
          _
        $region28: #{net_forward.1} parent=11 // pred_fallthru
          _
        // Predicated region
        $region29: #{net_forward.1} parent=11 // pred_check
          %p224 = pneg %p150
        $region30: #{net_forward.1} parent=11 // pred_check_branch
          %226 = sbr.rel (%p224) target = $region32
        $region31: #{net_forward.1} parent=11 // pred_region
          _
        $region32: #{net_forward.1} parent=11 // pred_fallthru
          _
        // Predicated region
        $region33: #{net_forward.1} parent=11 // pred_check
          %p227 = pneg %p171
        $region34: #{net_forward.1} parent=11 // pred_check_branch
          %229 = sbr.rel (%p227) target = $region36
        $region35: #{net_forward.1} parent=11 // pred_region
          _
        $region36: #{net_forward.1} parent=11 // pred_fallthru
          _
      $region12: #{net_forward.1} parent=5 // pred_fallthru
        _
      %p230 = scmp.lt.s32.totalorder %s19, 2
      // Predicated region
      $region37: #{net_forward.1} parent=5 // pred_check
        %p231 = pneg %p230
      $region38: #{net_forward.1} parent=5 // pred_check_branch
        %233 = sbr.rel (%p231) target = $region40
      $region39: #{net_forward.1} parent=5 // pred_region
        // Predicated region
        $region41: #{net_forward.1} parent=39 // pred_check
          %p234 = pneg %p39
        $region42: #{net_forward.1} parent=39 // pred_check_branch
          %236 = sbr.rel (%p234) target = $region44
        $region43: #{net_forward.1} parent=39 // pred_region
          %s237 = sand.u32 %s29, 1
          %s238 = scalar_lea.sflag [#allocation3], %s237
          %s239 = sand.u32 %s29, 1
          %s240 = smul.addr %s239, 64
          %s241 = scalar_lea.vmem [#allocation2], %s240
          %s242 = smul.u32 4, %s19
          %s244 = ssub.s32 1024, 1024
          %245 = vsyncadd %s238, %s244
          %s246 = smul.addr %s242, 128
          %s247 = scalar_lea.hbm %s0, %s246
          %s248 = sshll.u32 %s241, 4
          %s249 = int_to_ptr.vmem [resolvable:$true] %s248
          %254 = dma.hbm_to_vmem [thread:$0]  %s247, 1024, %s249, %s238, 1024, 512, 32
        $region44: #{net_forward.1} parent=39 // pred_fallthru
          _
      $region40: #{net_forward.1} parent=5 // pred_fallthru
        _
      %p255 = scmp.le.s32.totalorder 1, %s19
      %p256 = scmp.lt.s32.totalorder %s19, 3
      %p257 = pnand %p255, %p256
      %p258 = pneg %p257
      // Predicated region
      $region45: #{net_forward.1} parent=5 // pred_check
        _
      $region46: #{net_forward.1} parent=5 // pred_check_branch
        %260 = sbr.rel (%p257) target = $region48
      $region47: #{net_forward.1} parent=5 // pred_region
        %s261 = ssub.s32 %s19, 1
        %s262 = sand.u32 %s32, 1
        %s263 = scalar_lea.sflag [#allocation3], %s262
        %s264 = sand.u32 %s32, 1
        %s265 = smul.addr %s264, 64
        %s266 = scalar_lea.vmem [#allocation2], %s265
        // Predicated region
        $region49: #{net_forward.1} parent=47 // pred_check
          %p267 = pneg %p45
        $region50: #{net_forward.1} parent=47 // pred_check_branch
          %269 = sbr.rel (%p267) target = $region52
        $region51: #{net_forward.1} parent=47 // pred_region
          %270 = dma.done %s263, 1024
        $region52: #{net_forward.1} parent=47 // pred_fallthru
          _
        %s271 = sand.u32 %s32, 1
        %s272 = scalar_lea.sflag [#allocation3], %s271
        %s273 = sand.u32 %s32, 1
        %s274 = smul.addr %s273, 64
        %s275 = scalar_lea.vmem [#allocation2], %s274
        %p276 = pneg %p45
        %p277 = pneg %p42
        %p278 = pneg %p66
        %p279 = pneg %p63
        %p280 = pneg %p87
        %p281 = pneg %p84
        %p282 = pneg %p108
        %p283 = pneg %p105
        %p284 = pneg %p129
        %p285 = pneg %p126
        %p286 = pneg %p150
        %p287 = pneg %p147
        %p288 = pneg %p171
        %p289 = pneg %p168
        %p290 = pneg %p197
        %p291 = pneg %p194
        %s292 = sand.u32 %s184, 1
        %s293 = scalar_lea.sflag [#allocation4], %s292
        %s294 = sand.u32 %s184, 1
        %s295 = smul.addr %s294, 16
        %s296 = scalar_lea.vmem [#allocation5], %s295
        %s297 = smul.u32 4, %s24
        %s298 = smul.u32 4, %s24
        %v299 = vld [vmem:[%s266] sm:$0xff]
        %v300 = vld [vmem:[%s266 + $0x8] sm:$0xff]
        %v301 = vld [vmem:[%s266 + $0x10] sm:$0xff]
        %v302 = vld [vmem:[%s266 + $0x18] sm:$0xff]
        %v303 = vld [vmem:[%s266 + $0x20] sm:$0x3f]
        %v304 = vld [vmem:[%s266 + $0x28] sm:$0x3f]
        %v305 = vld [vmem:[%s266 + $0x30] sm:$0x3f]
        %v306 = vld [vmem:[%s266 + $0x38] sm:$0x3f]
        %v307 = vld [vmem:[%s1] sm:$0xff]
        %v308 = vld [vmem:[%s1 + $0x8] sm:$0x3f]
        %v309 = vld [vmem:[%s3] sm:$0xff]
        %v310 = vld [vmem:[%s3 + $0x8] sm:$0x3]
        %v311 = vld [vmem:[%s5] sm:$0x7]
        %v312 = vld [vmem:[%s2] sm:$0xff]
        %v313 = vld [vmem:[%s2 + $0x8] sm:$0x3f]
        %315 = vset.pattern.permute.xlu0 0
        %316 = vperm.xlu0 %315, %v312
        %v317 = vpop.permute.xlu0 %316
        %320 = vset.pattern.permute.xlu0 0
        %321 = vperm.xlu0 %320, %v313
        %v322 = vpop.permute.xlu0 %321
        %vm324 = vcmask 113664
        %v326 = vsel %vm324, %v307, 0
        %v329 = vsel %vm324, %v308, 0
        %vm331 = vcmask 1045504
        %v333 = vsel %vm331, %v303, 0
        %v336 = vsel %vm331, %v304, 0
        %v339 = vsel %vm331, %v305, 0
        %v342 = vsel %vm331, %v306, 0
        %344 = vmatprep.subr.mxu0 %v300
        %345 = vmatpush1.msra.mxu0 %v299
        %346 = vmatprep.subr.mxu0 %v336
        %347 = vmatpush1.msra.mxu0 %v333
        %348 = vmatprep.subr.mxu0 0.0
        %349 = vmatpush1.msra.mxu0 0.0
        %350 = vmatprep.subr.mxu0 0.0
        %351 = vmatpush1.msra.mxu0 0.0
        %352 = vmatprep.subr.mxu0 0.0
        %353 = vmatpush1.msra.mxu0 0.0
        %354 = vmatprep.subr.mxu0 0.0
        %355 = vmatpush1.msra.mxu0 0.0
        %356 = vmatprep.subr.mxu0 0.0
        %357 = vmatpush1.msra.mxu0 0.0
        %358 = vmatprep.subr.mxu0 0.0
        %359 = vmatpush1.msra.mxu0 0.0
        %360 = vmatprep.subr.mxu0 0.0
        %361 = vmatpush1.msra.mxu0 0.0
        %362 = vmatprep.subr.mxu0 0.0
        %363 = vmatpush1.msra.mxu0 0.0
        %364 = vmatprep.subr.mxu0 0.0
        %365 = vmatpush1.msra.mxu0 0.0
        %366 = vmatprep.subr.mxu0 0.0
        %367 = vmatpush1.msra.mxu0 0.0
        %368 = vmatprep.subr.mxu0 0.0
        %369 = vmatpush1.msra.mxu0 0.0
        %370 = vmatprep.subr.mxu0 0.0
        %371 = vmatpush1.msra.mxu0 0.0
        %372 = vmatprep.subr.mxu0 0.0
        %373 = vmatpush1.msra.mxu0 0.0
        %374 = vmatprep.subr.mxu0 0.0
        %375 = vmatpush1.msra.mxu0 0.0
        %376 = vmatprep.subr.mxu0 0.0
        %377 = vmatpush1.msra.mxu0 0.0
        %378 = vmatprep.subr.mxu0 0.0
        %379 = vmatpush1.msra.mxu0 0.0
        %380 = vmatprep.subr.mxu0 0.0
        %381 = vmatpush1.msra.mxu0 0.0
        %382 = vmatprep.subr.mxu0 0.0
        %383 = vmatpush1.msra.mxu0 0.0
        %384 = vmatprep.subr.mxu0 0.0
        %385 = vmatpush1.msra.mxu0 0.0
        %386 = vmatprep.subr.mxu0 0.0
        %387 = vmatpush1.msra.mxu0 0.0
        %388 = vmatprep.subr.mxu0 0.0
        %389 = vmatpush1.msra.mxu0 0.0
        %390 = vmatprep.subr.mxu0 0.0
        %391 = vmatpush1.msra.mxu0 0.0
        %392 = vmatprep.subr.mxu0 0.0
        %393 = vmatpush1.msra.mxu0 0.0
        %394 = vmatprep.subr.mxu0 0.0
        %395 = vmatpush1.msra.mxu0 0.0
        %396 = vmatprep.subr.mxu0 0.0
        %397 = vmatpush1.msra.mxu0 0.0
        %398 = vmatprep.subr.mxu0 0.0
        %399 = vmatpush1.msra.mxu0 0.0
        %400 = vmatprep.subr.mxu0 0.0
        %401 = vmatpush1.msra.mxu0 0.0
        %402 = vmatprep.subr.mxu0 0.0
        %403 = vmatpush1.msra.mxu0 0.0
        %404 = vmatprep.subr.mxu0 0.0
        %405 = vmatpush1.msra.mxu0 0.0
        %406 = vmatprep.subr.mxu0 0.0
        %407 = vmatpush1.msra.mxu0 0.0
        %408 = vmatprep.mubr.f32.mxu0 0.0
        %409 = vmatmul.mubr.f32.gmra.mrb[0].mxu0 %v326
        %v410 = vpop.f32.mrb[0].mxu0
        %v411 = vadd.f32 %v317, %v410
        %v412 = vpop.f32.mrb[0].mxu0
        %v413 = vadd.f32 %v317, %v412
        %414 = vmatprep.mubr.f32.mxu0 0.0
        %415 = vmatmul.mubr.f32.gmra.mrb[0].mxu0 %v329
        %v416 = vpop.f32.mrb[0].mxu0
        %v417 = vadd.f32 %v322, %v416
        %v418 = vpop.f32.mrb[0].mxu0
        %v419 = vadd.f32 %v322, %v418
        %420 = vdwg.mxu0
        %421 = vmatprep.subr.mxu0 %v302
        %422 = vmatpush1.msra.mxu0 %v301
        %423 = vmatprep.subr.mxu0 %v342
        %424 = vmatpush1.msra.mxu0 %v339
        %425 = vmatprep.subr.mxu0 0.0
        %426 = vmatpush1.msra.mxu0 0.0
        %427 = vmatprep.subr.mxu0 0.0
        %428 = vmatpush1.msra.mxu0 0.0
        %429 = vmatprep.subr.mxu0 0.0
        %430 = vmatpush1.msra.mxu0 0.0
        %431 = vmatprep.subr.mxu0 0.0
        %432 = vmatpush1.msra.mxu0 0.0
        %433 = vmatprep.subr.mxu0 0.0
        %434 = vmatpush1.msra.mxu0 0.0
        %435 = vmatprep.subr.mxu0 0.0
        %436 = vmatpush1.msra.mxu0 0.0
        %437 = vmatprep.subr.mxu0 0.0
        %438 = vmatpush1.msra.mxu0 0.0
        %439 = vmatprep.subr.mxu0 0.0
        %440 = vmatpush1.msra.mxu0 0.0
        %441 = vmatprep.subr.mxu0 0.0
        %442 = vmatpush1.msra.mxu0 0.0
        %443 = vmatprep.subr.mxu0 0.0
        %444 = vmatpush1.msra.mxu0 0.0
        %445 = vmatprep.subr.mxu0 0.0
        %446 = vmatpush1.msra.mxu0 0.0
        %447 = vmatprep.subr.mxu0 0.0
        %448 = vmatpush1.msra.mxu0 0.0
        %449 = vmatprep.subr.mxu0 0.0
        %450 = vmatpush1.msra.mxu0 0.0
        %451 = vmatprep.subr.mxu0 0.0
        %452 = vmatpush1.msra.mxu0 0.0
        %453 = vmatprep.subr.mxu0 0.0
        %454 = vmatpush1.msra.mxu0 0.0
        %455 = vmatprep.subr.mxu0 0.0
        %456 = vmatpush1.msra.mxu0 0.0
        %457 = vmatprep.subr.mxu0 0.0
        %458 = vmatpush1.msra.mxu0 0.0
        %459 = vmatprep.subr.mxu0 0.0
        %460 = vmatpush1.msra.mxu0 0.0
        %461 = vmatprep.subr.mxu0 0.0
        %462 = vmatpush1.msra.mxu0 0.0
        %463 = vmatprep.subr.mxu0 0.0
        %464 = vmatpush1.msra.mxu0 0.0
        %465 = vmatprep.subr.mxu0 0.0
        %466 = vmatpush1.msra.mxu0 0.0
        %467 = vmatprep.subr.mxu0 0.0
        %468 = vmatpush1.msra.mxu0 0.0
        %469 = vmatprep.subr.mxu0 0.0
        %470 = vmatpush1.msra.mxu0 0.0
        %471 = vmatprep.subr.mxu0 0.0
        %472 = vmatpush1.msra.mxu0 0.0
        %473 = vmatprep.subr.mxu0 0.0
        %474 = vmatpush1.msra.mxu0 0.0
        %475 = vmatprep.subr.mxu0 0.0
        %476 = vmatpush1.msra.mxu0 0.0
        %477 = vmatprep.subr.mxu0 0.0
        %478 = vmatpush1.msra.mxu0 0.0
        %479 = vmatprep.subr.mxu0 0.0
        %480 = vmatpush1.msra.mxu0 0.0
        %481 = vmatprep.subr.mxu0 0.0
        %482 = vmatpush1.msra.mxu0 0.0
        %483 = vmatprep.subr.mxu0 0.0
        %484 = vmatpush1.msra.mxu0 0.0
        %485 = vmatprep.mubr.f32.mxu0 0.0
        %486 = vmatmul.mubr.f32.gmra.mrb[0].mxu0 %v326
        %v487 = vpop.f32.mrb[0].mxu0
        %v488 = vadd.f32 %v317, %v487
        %v489 = vpop.f32.mrb[0].mxu0
        %v490 = vadd.f32 %v317, %v489
        %491 = vmatprep.mubr.f32.mxu0 0.0
        %492 = vmatmul.mubr.f32.gmra.mrb[0].mxu0 %v329
        %v493 = vpop.f32.mrb[0].mxu0
        %v494 = vadd.f32 %v322, %v493
        %v495 = vpop.f32.mrb[0].mxu0
        %v496 = vadd.f32 %v322, %v495
        %497 = vdwg.mxu0
        %v498 = vmax.f32 %v411, 0.0
        %v499 = vmax.f32 %v413, 0.0
        %v500 = vmax.f32 %v488, 0.0
        %v501 = vmax.f32 %v490, 0.0
        %v502 = vmax.f32 %v417, 0.0
        %v503 = vmax.f32 %v419, 0.0
        %v504 = vmax.f32 %v494, 0.0
        %v505 = vmax.f32 %v496, 0.0
        %v506 = vld [vmem:[%s4] sm:$0xff]
        %v507 = vld [vmem:[%s4 + $0x8] sm:$0x3]
        %509 = vset.pattern.permute.xlu0 0
        %510 = vperm.xlu0 %509, %v506
        %v511 = vpop.permute.xlu0 %510
        %514 = vset.pattern.permute.xlu0 0
        %515 = vperm.xlu0 %514, %v507
        %v516 = vpop.permute.xlu0 %515
        %v519 = vsel %vm324, %v309, 0
        %v522 = vsel %vm324, %v310, 0
        %v525 = vsel %vm331, %v502, 0
        %v528 = vsel %vm331, %v503, 0
        %v531 = vsel %vm331, %v504, 0
        %v534 = vsel %vm331, %v505, 0
        %536 = vmatprep.subr.mxu0 %v499
        %537 = vmatpush1.msra.mxu0 %v498
        %538 = vmatprep.subr.mxu0 %v528
        %539 = vmatpush1.msra.mxu0 %v525
        %540 = vmatprep.subr.mxu0 0.0
        %541 = vmatpush1.msra.mxu0 0.0
        %542 = vmatprep.subr.mxu0 0.0
        %543 = vmatpush1.msra.mxu0 0.0
        %544 = vmatprep.subr.mxu0 0.0
        %545 = vmatpush1.msra.mxu0 0.0
        %546 = vmatprep.subr.mxu0 0.0
        %547 = vmatpush1.msra.mxu0 0.0
        %548 = vmatprep.subr.mxu0 0.0
        %549 = vmatpush1.msra.mxu0 0.0
        %550 = vmatprep.subr.mxu0 0.0
        %551 = vmatpush1.msra.mxu0 0.0
        %552 = vmatprep.subr.mxu0 0.0
        %553 = vmatpush1.msra.mxu0 0.0
        %554 = vmatprep.subr.mxu0 0.0
        %555 = vmatpush1.msra.mxu0 0.0
        %556 = vmatprep.subr.mxu0 0.0
        %557 = vmatpush1.msra.mxu0 0.0
        %558 = vmatprep.subr.mxu0 0.0
        %559 = vmatpush1.msra.mxu0 0.0
        %560 = vmatprep.subr.mxu0 0.0
        %561 = vmatpush1.msra.mxu0 0.0
        %562 = vmatprep.subr.mxu0 0.0
        %563 = vmatpush1.msra.mxu0 0.0
        %564 = vmatprep.subr.mxu0 0.0
        %565 = vmatpush1.msra.mxu0 0.0
        %566 = vmatprep.subr.mxu0 0.0
        %567 = vmatpush1.msra.mxu0 0.0
        %568 = vmatprep.subr.mxu0 0.0
        %569 = vmatpush1.msra.mxu0 0.0
        %570 = vmatprep.subr.mxu0 0.0
        %571 = vmatpush1.msra.mxu0 0.0
        %572 = vmatprep.subr.mxu0 0.0
        %573 = vmatpush1.msra.mxu0 0.0
        %574 = vmatprep.subr.mxu0 0.0
        %575 = vmatpush1.msra.mxu0 0.0
        %576 = vmatprep.subr.mxu0 0.0
        %577 = vmatpush1.msra.mxu0 0.0
        %578 = vmatprep.subr.mxu0 0.0
        %579 = vmatpush1.msra.mxu0 0.0
        %580 = vmatprep.subr.mxu0 0.0
        %581 = vmatpush1.msra.mxu0 0.0
        %582 = vmatprep.subr.mxu0 0.0
        %583 = vmatpush1.msra.mxu0 0.0
        %584 = vmatprep.subr.mxu0 0.0
        %585 = vmatpush1.msra.mxu0 0.0
        %586 = vmatprep.subr.mxu0 0.0
        %587 = vmatpush1.msra.mxu0 0.0
        %588 = vmatprep.subr.mxu0 0.0
        %589 = vmatpush1.msra.mxu0 0.0
        %590 = vmatprep.subr.mxu0 0.0
        %591 = vmatpush1.msra.mxu0 0.0
        %592 = vmatprep.subr.mxu0 0.0
        %593 = vmatpush1.msra.mxu0 0.0
        %594 = vmatprep.subr.mxu0 0.0
        %595 = vmatpush1.msra.mxu0 0.0
        %596 = vmatprep.subr.mxu0 0.0
        %597 = vmatpush1.msra.mxu0 0.0
        %598 = vmatprep.subr.mxu0 0.0
        %599 = vmatpush1.msra.mxu0 0.0
        %600 = vmatprep.mubr.f32.mxu0 0.0
        %601 = vmatmul.mubr.f32.gmra.mrb[0].mxu0 %v519
        %v602 = vpop.f32.mrb[0].mxu0
        %v603 = vadd.f32 %v511, %v602
        %v604 = vpop.f32.mrb[0].mxu0
        %v605 = vadd.f32 %v511, %v604
        %606 = vmatprep.mubr.f32.mxu0 0.0
        %607 = vmatmul.mubr.f32.gmra.mrb[0].mxu0 %v522
        %v608 = vpop.f32.mrb[0].mxu0
        %v609 = vadd.f32 %v516, %v608
        %v610 = vpop.f32.mrb[0].mxu0
        %v611 = vadd.f32 %v516, %v610
        %612 = vdwg.mxu0
        %613 = vmatprep.subr.mxu0 %v501
        %614 = vmatpush1.msra.mxu0 %v500
        %615 = vmatprep.subr.mxu0 %v534
        %616 = vmatpush1.msra.mxu0 %v531
        %617 = vmatprep.subr.mxu0 0.0
        %618 = vmatpush1.msra.mxu0 0.0
        %619 = vmatprep.subr.mxu0 0.0
        %620 = vmatpush1.msra.mxu0 0.0
        %621 = vmatprep.subr.mxu0 0.0
        %622 = vmatpush1.msra.mxu0 0.0
        %623 = vmatprep.subr.mxu0 0.0
        %624 = vmatpush1.msra.mxu0 0.0
        %625 = vmatprep.subr.mxu0 0.0
        %626 = vmatpush1.msra.mxu0 0.0
        %627 = vmatprep.subr.mxu0 0.0
        %628 = vmatpush1.msra.mxu0 0.0
        %629 = vmatprep.subr.mxu0 0.0
        %630 = vmatpush1.msra.mxu0 0.0
        %631 = vmatprep.subr.mxu0 0.0
        %632 = vmatpush1.msra.mxu0 0.0
        %633 = vmatprep.subr.mxu0 0.0
        %634 = vmatpush1.msra.mxu0 0.0
        %635 = vmatprep.subr.mxu0 0.0
        %636 = vmatpush1.msra.mxu0 0.0
        %637 = vmatprep.subr.mxu0 0.0
        %638 = vmatpush1.msra.mxu0 0.0
        %639 = vmatprep.subr.mxu0 0.0
        %640 = vmatpush1.msra.mxu0 0.0
        %641 = vmatprep.subr.mxu0 0.0
        %642 = vmatpush1.msra.mxu0 0.0
        %643 = vmatprep.subr.mxu0 0.0
        %644 = vmatpush1.msra.mxu0 0.0
        %645 = vmatprep.subr.mxu0 0.0
        %646 = vmatpush1.msra.mxu0 0.0
        %647 = vmatprep.subr.mxu0 0.0
        %648 = vmatpush1.msra.mxu0 0.0
        %649 = vmatprep.subr.mxu0 0.0
        %650 = vmatpush1.msra.mxu0 0.0
        %651 = vmatprep.subr.mxu0 0.0
        %652 = vmatpush1.msra.mxu0 0.0
        %653 = vmatprep.subr.mxu0 0.0
        %654 = vmatpush1.msra.mxu0 0.0
        %655 = vmatprep.subr.mxu0 0.0
        %656 = vmatpush1.msra.mxu0 0.0
        %657 = vmatprep.subr.mxu0 0.0
        %658 = vmatpush1.msra.mxu0 0.0
        %659 = vmatprep.subr.mxu0 0.0
        %660 = vmatpush1.msra.mxu0 0.0
        %661 = vmatprep.subr.mxu0 0.0
        %662 = vmatpush1.msra.mxu0 0.0
        %663 = vmatprep.subr.mxu0 0.0
        %664 = vmatpush1.msra.mxu0 0.0
        %665 = vmatprep.subr.mxu0 0.0
        %666 = vmatpush1.msra.mxu0 0.0
        %667 = vmatprep.subr.mxu0 0.0
        %668 = vmatpush1.msra.mxu0 0.0
        %669 = vmatprep.subr.mxu0 0.0
        %670 = vmatpush1.msra.mxu0 0.0
        %671 = vmatprep.subr.mxu0 0.0
        %672 = vmatpush1.msra.mxu0 0.0
        %673 = vmatprep.subr.mxu0 0.0
        %674 = vmatpush1.msra.mxu0 0.0
        %675 = vmatprep.subr.mxu0 0.0
        %676 = vmatpush1.msra.mxu0 0.0
        %677 = vmatprep.mubr.f32.mxu0 0.0
        %678 = vmatmul.mubr.f32.gmra.mrb[0].mxu0 %v519
        %v679 = vpop.f32.mrb[0].mxu0
        %v680 = vadd.f32 %v511, %v679
        %v681 = vpop.f32.mrb[0].mxu0
        %v682 = vadd.f32 %v511, %v681
        %683 = vmatprep.mubr.f32.mxu0 0.0
        %684 = vmatmul.mubr.f32.gmra.mrb[0].mxu0 %v522
        %v685 = vpop.f32.mrb[0].mxu0
        %v686 = vadd.f32 %v516, %v685
        %v687 = vpop.f32.mrb[0].mxu0
        %v688 = vadd.f32 %v516, %v687
        %689 = vdwg.mxu0
        %v690 = vmax.f32 %v603, 0.0
        %v691 = vmax.f32 %v605, 0.0
        %v692 = vmax.f32 %v680, 0.0
        %v693 = vmax.f32 %v682, 0.0
        %v694 = vmax.f32 %v609, 0.0
        %v695 = vmax.f32 %v611, 0.0
        %v696 = vmax.f32 %v686, 0.0
        %v697 = vmax.f32 %v688, 0.0
        %v698 = vld [vmem:[%s6] sm:$0x7]
        %700 = vset.pattern.permute.xlu0 0
        %701 = vperm.xlu0 %700, %v698
        %v702 = vpop.permute.xlu0 %701
        %vm704 = vcmask 80896
        %v706 = vsel %vm704, %v311, 0
        %vm708 = vcmask 1041408
        %v710 = vsel %vm708, %v694, 0
        %v713 = vsel %vm708, %v695, 0
        %v716 = vsel %vm708, %v696, 0
        %v719 = vsel %vm708, %v697, 0
        %721 = vmatprep.subr.mxu0 %v691
        %722 = vmatpush1.msra.mxu0 %v690
        %723 = vmatprep.subr.mxu0 %v713
        %724 = vmatpush1.msra.mxu0 %v710
        %725 = vmatprep.subr.mxu0 0.0
        %726 = vmatpush1.msra.mxu0 0.0
        %727 = vmatprep.subr.mxu0 0.0
        %728 = vmatpush1.msra.mxu0 0.0
        %729 = vmatprep.subr.mxu0 0.0
        %730 = vmatpush1.msra.mxu0 0.0
        %731 = vmatprep.subr.mxu0 0.0
        %732 = vmatpush1.msra.mxu0 0.0
        %733 = vmatprep.subr.mxu0 0.0
        %734 = vmatpush1.msra.mxu0 0.0
        %735 = vmatprep.subr.mxu0 0.0
        %736 = vmatpush1.msra.mxu0 0.0
        %737 = vmatprep.subr.mxu0 0.0
        %738 = vmatpush1.msra.mxu0 0.0
        %739 = vmatprep.subr.mxu0 0.0
        %740 = vmatpush1.msra.mxu0 0.0
        %741 = vmatprep.subr.mxu0 0.0
        %742 = vmatpush1.msra.mxu0 0.0
        %743 = vmatprep.subr.mxu0 0.0
        %744 = vmatpush1.msra.mxu0 0.0
        %745 = vmatprep.subr.mxu0 0.0
        %746 = vmatpush1.msra.mxu0 0.0
        %747 = vmatprep.subr.mxu0 0.0
        %748 = vmatpush1.msra.mxu0 0.0
        %749 = vmatprep.subr.mxu0 0.0
        %750 = vmatpush1.msra.mxu0 0.0
        %751 = vmatprep.subr.mxu0 0.0
        %752 = vmatpush1.msra.mxu0 0.0
        %753 = vmatprep.subr.mxu0 0.0
        %754 = vmatpush1.msra.mxu0 0.0
        %755 = vmatprep.subr.mxu0 0.0
        %756 = vmatpush1.msra.mxu0 0.0
        %757 = vmatprep.subr.mxu0 0.0
        %758 = vmatpush1.msra.mxu0 0.0
        %759 = vmatprep.subr.mxu0 0.0
        %760 = vmatpush1.msra.mxu0 0.0
        %761 = vmatprep.subr.mxu0 0.0
        %762 = vmatpush1.msra.mxu0 0.0
        %763 = vmatprep.subr.mxu0 0.0
        %764 = vmatpush1.msra.mxu0 0.0
        %765 = vmatprep.subr.mxu0 0.0
        %766 = vmatpush1.msra.mxu0 0.0
        %767 = vmatprep.subr.mxu0 0.0
        %768 = vmatpush1.msra.mxu0 0.0
        %769 = vmatprep.subr.mxu0 0.0
        %770 = vmatpush1.msra.mxu0 0.0
        %771 = vmatprep.subr.mxu0 0.0
        %772 = vmatpush1.msra.mxu0 0.0
        %773 = vmatprep.subr.mxu0 0.0
        %774 = vmatpush1.msra.mxu0 0.0
        %775 = vmatprep.subr.mxu0 0.0
        %776 = vmatpush1.msra.mxu0 0.0
        %777 = vmatprep.subr.mxu0 0.0
        %778 = vmatpush1.msra.mxu0 0.0
        %779 = vmatprep.subr.mxu0 0.0
        %780 = vmatpush1.msra.mxu0 0.0
        %781 = vmatprep.subr.mxu0 0.0
        %782 = vmatpush1.msra.mxu0 0.0
        %783 = vmatprep.subr.mxu0 0.0
        %784 = vmatpush1.msra.mxu0 0.0
        %785 = vmatprep.mubr.f32.mxu0 0.0
        %786 = vmatmul.mubr.f32.gmra.mrb[0].mxu0 %v706
        %v787 = vpop.f32.mrb[0].mxu0
        %v788 = vadd.f32 %v702, %v787
        %v789 = vpop.f32.mrb[0].mxu0
        %v790 = vadd.f32 %v702, %v789
        %791 = vdwg.mxu0
        %792 = vmatprep.subr.mxu0 %v693
        %793 = vmatpush1.msra.mxu0 %v692
        %794 = vmatprep.subr.mxu0 %v719
        %795 = vmatpush1.msra.mxu0 %v716
        %796 = vmatprep.subr.mxu0 0.0
        %797 = vmatpush1.msra.mxu0 0.0
        %798 = vmatprep.subr.mxu0 0.0
        %799 = vmatpush1.msra.mxu0 0.0
        %800 = vmatprep.subr.mxu0 0.0
        %801 = vmatpush1.msra.mxu0 0.0
        %802 = vmatprep.subr.mxu0 0.0
        %803 = vmatpush1.msra.mxu0 0.0
        %804 = vmatprep.subr.mxu0 0.0
        %805 = vmatpush1.msra.mxu0 0.0
        %806 = vmatprep.subr.mxu0 0.0
        %807 = vmatpush1.msra.mxu0 0.0
        %808 = vmatprep.subr.mxu0 0.0
        %809 = vmatpush1.msra.mxu0 0.0
        %810 = vmatprep.subr.mxu0 0.0
        %811 = vmatpush1.msra.mxu0 0.0
        %812 = vmatprep.subr.mxu0 0.0
        %813 = vmatpush1.msra.mxu0 0.0
        %814 = vmatprep.subr.mxu0 0.0
        %815 = vmatpush1.msra.mxu0 0.0
        %816 = vmatprep.subr.mxu0 0.0
        %817 = vmatpush1.msra.mxu0 0.0
        %818 = vmatprep.subr.mxu0 0.0
        %819 = vmatpush1.msra.mxu0 0.0
        %820 = vmatprep.subr.mxu0 0.0
        %821 = vmatpush1.msra.mxu0 0.0
        %822 = vmatprep.subr.mxu0 0.0
        %823 = vmatpush1.msra.mxu0 0.0
        %824 = vmatprep.subr.mxu0 0.0
        %825 = vmatpush1.msra.mxu0 0.0
        %826 = vmatprep.subr.mxu0 0.0
        %827 = vmatpush1.msra.mxu0 0.0
        %828 = vmatprep.subr.mxu0 0.0
        %829 = vmatpush1.msra.mxu0 0.0
        %830 = vmatprep.subr.mxu0 0.0
        %831 = vmatpush1.msra.mxu0 0.0
        %832 = vmatprep.subr.mxu0 0.0
        %833 = vmatpush1.msra.mxu0 0.0
        %834 = vmatprep.subr.mxu0 0.0
        %835 = vmatpush1.msra.mxu0 0.0
        %836 = vmatprep.subr.mxu0 0.0
        %837 = vmatpush1.msra.mxu0 0.0
        %838 = vmatprep.subr.mxu0 0.0
        %839 = vmatpush1.msra.mxu0 0.0
        %840 = vmatprep.subr.mxu0 0.0
        %841 = vmatpush1.msra.mxu0 0.0
        %842 = vmatprep.subr.mxu0 0.0
        %843 = vmatpush1.msra.mxu0 0.0
        %844 = vmatprep.subr.mxu0 0.0
        %845 = vmatpush1.msra.mxu0 0.0
        %846 = vmatprep.subr.mxu0 0.0
        %847 = vmatpush1.msra.mxu0 0.0
        %848 = vmatprep.subr.mxu0 0.0
        %849 = vmatpush1.msra.mxu0 0.0
        %850 = vmatprep.subr.mxu0 0.0
        %851 = vmatpush1.msra.mxu0 0.0
        %852 = vmatprep.subr.mxu0 0.0
        %853 = vmatpush1.msra.mxu0 0.0
        %854 = vmatprep.subr.mxu0 0.0
        %855 = vmatpush1.msra.mxu0 0.0
        %856 = vmatprep.mubr.f32.mxu0 0.0
        %857 = vmatmul.mubr.f32.gmra.mrb[0].mxu0 %v706
        %v858 = vpop.f32.mrb[0].mxu0
        %v859 = vadd.f32 %v702, %v858
        %v860 = vpop.f32.mrb[0].mxu0
        %v861 = vadd.f32 %v702, %v860
        %862 = vdwg.mxu0
        %vm863 = vcmask 1042432
        %v864 = vsel %vm863, %v788, -inf
        %v865 = vrot.slane %v864, 4
        %v866 = vmax.f32 %v864, %v865
        %v867 = vrot.slane %v866, 2
        %v868 = vmax.f32 %v866, %v867
        %v869 = vrot.slane %v868, 1
        %v870 = vmax.f32 %v868, %v869
        %v871 = vsel %vm863, %v790, -inf
        %v872 = vrot.slane %v871, 4
        %v873 = vmax.f32 %v871, %v872
        %v874 = vrot.slane %v873, 2
        %v875 = vmax.f32 %v873, %v874
        %v876 = vrot.slane %v875, 1
        %v877 = vmax.f32 %v875, %v876
        %v878 = vsel %vm863, %v859, -inf
        %v879 = vrot.slane %v878, 4
        %v880 = vmax.f32 %v878, %v879
        %v881 = vrot.slane %v880, 2
        %v882 = vmax.f32 %v880, %v881
        %v883 = vrot.slane %v882, 1
        %v884 = vmax.f32 %v882, %v883
        %v885 = vsel %vm863, %v861, -inf
        %v886 = vrot.slane %v885, 4
        %v887 = vmax.f32 %v885, %v886
        %v888 = vrot.slane %v887, 2
        %v889 = vmax.f32 %v887, %v888
        %v890 = vrot.slane %v889, 1
        %v891 = vmax.f32 %v889, %v890
        %v892 = vsub.f32 %v788, %v870
        %v893 = vsub.f32 %v790, %v877
        %v894 = vsub.f32 %v859, %v884
        %v895 = vsub.f32 %v861, %v891
        %v896 = vmul.f32 %v892, 1.442695
        %v897 = vpow.pop %v896
        %v898 = vmul.f32 %v893, 1.442695
        %v899 = vpow.pop %v898
        %v900 = vmul.f32 %v894, 1.442695
        %v901 = vpow.pop %v900
        %v902 = vmul.f32 %v895, 1.442695
        %v903 = vpow.pop %v902
        %v904 = vsel %vm863, %v897, 0.0
        %v905 = vrot.slane %v904, 4
        %v906 = vadd.f32 %v904, %v905
        %v907 = vrot.slane %v906, 2
        %v908 = vadd.f32 %v906, %v907
        %v909 = vrot.slane %v908, 1
        %v910 = vadd.f32 %v908, %v909
        %v911 = vsel %vm863, %v899, 0.0
        %v912 = vrot.slane %v911, 4
        %v913 = vadd.f32 %v911, %v912
        %v914 = vrot.slane %v913, 2
        %v915 = vadd.f32 %v913, %v914
        %v916 = vrot.slane %v915, 1
        %v917 = vadd.f32 %v915, %v916
        %v918 = vsel %vm863, %v901, 0.0
        %v919 = vrot.slane %v918, 4
        %v920 = vadd.f32 %v918, %v919
        %v921 = vrot.slane %v920, 2
        %v922 = vadd.f32 %v920, %v921
        %v923 = vrot.slane %v922, 1
        %v924 = vadd.f32 %v922, %v923
        %v925 = vsel %vm863, %v903, 0.0
        %v926 = vrot.slane %v925, 4
        %v927 = vadd.f32 %v925, %v926
        %v928 = vrot.slane %v927, 2
        %v929 = vadd.f32 %v927, %v928
        %v930 = vrot.slane %v929, 1
        %v931 = vadd.f32 %v929, %v930
        %v932 = vlog2.pop %v910
        %v933 = vmul.f32 %v932, 0.6931472
        %v934 = vlog2.pop %v917
        %v935 = vmul.f32 %v934, 0.6931472
        %v936 = vlog2.pop %v924
        %v937 = vmul.f32 %v936, 0.6931472
        %v938 = vlog2.pop %v931
        %v939 = vmul.f32 %v938, 0.6931472
        %v940 = vsub.f32 %v892, %v933
        %v941 = vsub.f32 %v893, %v935
        %v942 = vsub.f32 %v894, %v937
        %v943 = vsub.f32 %v895, %v939
        %v948 = vcombine.low %v940, %v941
        %v949 = vcombine.low %v942, %v943
        %952 = vst [vmem:[%s296] sm:$0x77] %v948
        %953 = vst [vmem:[%s296 + $0x8] sm:$0x77] %v949
        %s954 = sand.u32 %s184, 1
        %s955 = scalar_lea.sflag [#allocation4], %s954
        %s956 = sand.u32 %s184, 1
        %s957 = smul.addr %s956, 16
        %s958 = scalar_lea.vmem [#allocation5], %s957
        // Predicated region
        $region53: #{net_forward.1} parent=47 // pred_check
          %p959 = pneg %p194
        $region54: #{net_forward.1} parent=47 // pred_check_branch
          %961 = sbr.rel (%p959) target = $region56
        $region55: #{net_forward.1} parent=47 // pred_region
          %s962 = smul.u32 4, %s24
          %s964 = ssub.s32 256, 256
          %965 = vsyncadd %s955, %s964
          %s966 = smul.addr %s962, 64
          %s967 = scalar_lea.hbm %s7, %s966
          %s969 = sshll.u32 %s958, 4
          %s970 = int_to_ptr.vmem [resolvable:$true] %s969
          %972 = dma.vmem_to_hbm [thread:$0]  %s970, 256, %s967, %s955
        $region56: #{net_forward.1} parent=47 // pred_fallthru
          _
      $region48: #{net_forward.1} parent=5 // pred_fallthru
        _
      %p973 = scmp.le.s32.totalorder 2, %s19
      // Predicated region
      $region57: #{net_forward.1} parent=5 // pred_check
        %p974 = pneg %p973
      $region58: #{net_forward.1} parent=5 // pred_check_branch
        %976 = sbr.rel (%p974) target = $region60
      $region59: #{net_forward.1} parent=5 // pred_region
        %s977 = ssub.s32 %s19, 2
        // Predicated region
        $region61: #{net_forward.1} parent=59 // pred_check
          %p978 = pneg %p200
        $region62: #{net_forward.1} parent=59 // pred_check_branch
          %980 = sbr.rel (%p978) target = $region64
        $region63: #{net_forward.1} parent=59 // pred_region
          %s981 = sand.u32 %s185, 1
          %s982 = scalar_lea.sflag [#allocation4], %s981
          %s983 = sand.u32 %s185, 1
          %s984 = smul.addr %s983, 16
          %s985 = scalar_lea.vmem [#allocation5], %s984
          %986 = dma.done %s982, 256
        $region64: #{net_forward.1} parent=59 // pred_fallthru
          _
      $region60: #{net_forward.1} parent=5 // pred_fallthru
        _
    $region6: #{net_forward.1} parent=1 // loop_footer
      %s23 = sadd.s32 1, %s19
    $region7: #{net_forward.1} parent=1 // loop_footer_branch
      %18 = sbr.rel target = $region3
    $region8: #{net_forward.1} parent=1 // loop_exit
      _
    %987 = vsyncpa [#allocation3], 1
    %s988 = scalar_lea.sflag [#allocation3], 1
    %989 = vsyncpa %s988, 1
    %990 = vsyncpa [#allocation4], 1
    %s991 = scalar_lea.sflag [#allocation4], 1
    %992 = vsyncpa %s991, 1

</llo_original>
